<compile_context>
chip_gen: v7x
topology: tpu7x:2x2x1
jax: 0.10.0
libtpu: 0.0.40
codegen_flags: <defaults>
</compile_context>

<pallas_src>
import numpy as np
import jax
import jax.numpy as jnp
from jax import lax
from jax.experimental import pallas as pl
from jax.experimental.pallas import tpu as pltpu

# ----- module hyper-parameters (from the PyTorch module) -----
N_BLOCK = 3
INPUT_DIM = 64 * 4          # 256
INPUT_SPLIT = 4
KERNEL_SZ = 3
OUT_CHAN = 8
BATCH = 2
LRELU_SLOPE = 0.01          # nn.LeakyReLU default
BN_EPS = 1e-3               # module sets BatchNorm1d(1, eps=0.001) explicitly

# ----- derived static dimensions -----
L_SPLIT = INPUT_DIM // INPUT_SPLIT     # 64
L1_OUT = L_SPLIT // 2                  # 32
L2_OUT = L1_OUT // 2                   # 16
L3_OUT = L2_OUT // 2                   # 8
N1 = OUT_CHAN * L1_OUT                 # 256
N2 = OUT_CHAN * L2_OUT                 # 128
N3 = OUT_CHAN * L3_OUT                 # 64
N3_PAD = 128                           # lane-padded final matmul width

# ----- packed parameter-slab row layout (all starts multiples of 8) -----
SLAB_COLS = 256
ROW_B1 = 0                             # rows [0,8):   b1 broadcast, cols [0,256)
ROW_B23 = 8                            # rows [8,16):  b2 cols [0,128), b3(pad) cols [128,256)
ROW_W1 = 16                            # rows [16,80):  W1 (64, 256)
ROW_W2 = ROW_W1 + L_SPLIT              # rows [80,336): W2 (256, 128) in cols [0,128)
ROW_W3 = ROW_W2                        # rows [80,208): W3 (128, 128pad) in cols [128,256)
SLAB_ROWS = ROW_W2 + N1                # 336


# ---------------- parameter construction (deterministic, glue) ----------------
def conv_block_params(key, in_ch, out_ch, ksz):
    kw, kb = jax.random.split(key)
    # Conv_block.init_weights(): weight ~ N(0, 0.01); bias keeps PyTorch default uniform init
    w = 0.01 * jax.random.normal(kw, (out_ch, in_ch, ksz), jnp.float32)
    bound = 1.0 / np.sqrt(in_ch * ksz)
    b = jax.random.uniform(kb, (out_ch,), jnp.float32, -bound, bound)
    return w, b


def lower_conv1d(w, b, lin):
    """Lower Conv1d(stride=2, padding=K//2, dilation=1) into a dense
    (Cin*Lin, Cout*Lout) matrix so conv == x_flat @ Wd + bd (setup-time only)."""
    w = np.asarray(w)
    b = np.asarray(b)
    cout, cin, K = w.shape
    pad = K // 2
    lout = (lin + 2 * pad - (K - 1) - 1) // 2 + 1
    Wd = np.zeros((cin * lin, cout * lout), np.float32)
    for t in range(lout):
        for k in range(K):
            i = 2 * t + k - pad          # input position feeding output t, tap k
            if 0 <= i < lin:
                for ci in range(cin):
                    for co in range(cout):
                        Wd[ci * lin + i, co * lout + t] = w[co, ci, k]
    bd = np.repeat(b, lout).astype(np.float32)       # bias[co] broadcast over positions
    return Wd, bd, lout


def pack_params(lowered):
    """Pack the three lowered weight matrices + biases into one tile-aligned slab."""
    (W1, b1), (W2, b2), (W3, b3) = lowered
    slab = np.zeros((SLAB_ROWS, SLAB_COLS), np.float32)
    slab[ROW_B1:ROW_B1 + 8, :N1] = np.tile(b1[None, :], (8, 1))
    slab[ROW_B23:ROW_B23 + 8, :N2] = np.tile(b2[None, :], (8, 1))
    slab[ROW_B23:ROW_B23 + 8, 128:128 + N3] = np.tile(b3[None, :], (8, 1))
    slab[ROW_W1:ROW_W1 + L_SPLIT, :N1] = W1
    slab[ROW_W2:ROW_W2 + N1, :N2] = W2
    slab[ROW_W3:ROW_W3 + N2, 128:128 + N3] = W3      # N3..N3_PAD columns stay zero
    return jnp.asarray(slab)


# ------------------------------ Pallas kernel ---------------------------------
def fold_encoder_kernel(x_ref, p_ref, o_ref):
    def lrelu(v):
        return jnp.where(v > 0, v, LRELU_SLOPE * v)

    x = x_ref[...]                                   # (B*split, L_split) = (8, 64)
    # BatchNorm1d(1, eps=1e-3), training-mode batch stats (gamma=1, beta=0):
    # biased mean/var over all B*W elements of the single channel (matches PyTorch).
    # TODO(synk): eval-mode running_mean/running_var path not modeled.
    mu = jnp.mean(x)
    var = jnp.mean((x - mu) ** 2)
    h = (x - mu) * lax.rsqrt(var + BN_EPS)

    # Static, tile-aligned views into the packed parameter slab (sublane starts
    # are multiples of 8, lane starts multiples of 128 -> zero-cost loads).
    b1 = p_ref[ROW_B1:ROW_B1 + 8, :]                 # (8, 256)  pre-broadcast bias
    b2 = p_ref[ROW_B23:ROW_B23 + 8, 0:128]           # (8, 128)
    b3 = p_ref[ROW_B23:ROW_B23 + 8, 128:256]         # (8, 128)  (cols >=64 are zero)
    w1 = p_ref[ROW_W1:ROW_W1 + L_SPLIT, :]           # (64, 256)
    w2 = p_ref[ROW_W2:ROW_W2 + N1, 0:128]            # (256, 128)
    w3 = p_ref[ROW_W3:ROW_W3 + N2, 128:256]          # (128, 128) lane-padded

    # Conv_block x3: stride-2 conv lowered to MXU matmul + LeakyReLU
    # (pool_op is identity when is_conv=True).
    h = lrelu(jnp.dot(h, w1, preferred_element_type=jnp.float32) + b1)   # (8, 256)
    h = lrelu(jnp.dot(h, w2, preferred_element_type=jnp.float32) + b2)   # (8, 128)
    h = lrelu(jnp.dot(h, w3, preferred_element_type=jnp.float32) + b3)   # (8, 128); cols 64: == 0
    o_ref[...] = h                                   # single unmasked lane-dense store


# ------------------------------- wrapper ---------------------------------------
@jax.jit
def fold_encoder_forward(x, slab):
    B, _, W = x.shape
    l_split = W // INPUT_SPLIT
    M = B * INPUT_SPLIT

    # (B, 1, W) -> (B*split, L_split): row m = b*split + s, pure reshape.
    x2d = x[:, 0, :].reshape(M, l_split)

    vmem = pl.BlockSpec(memory_space=pltpu.MemorySpace.VMEM)
    out2d = pl.pallas_call(
        fold_encoder_kernel,
        out_shape=jax.ShapeDtypeStruct((M, N3_PAD), jnp.float32),
        in_specs=[vmem, vmem],
        out_specs=vmem,
    )(x2d, slab)

    # Module-layout epilogue: (B*split, Cout*Lf [pad]) -> (B, Cout, split*Lf).
    # Single fused XLA op.  Downstream consumers that accept the kernel-native
    # layout should use out2d[:, :N3] directly and skip this dispatch.
    l_final = l_split // (2 ** N_BLOCK)
    out = out2d[:, :OUT_CHAN * l_final].reshape(B, INPUT_SPLIT, OUT_CHAN, l_final)
    out = out.transpose(0, 2, 1, 3).reshape(B, OUT_CHAN, INPUT_SPLIT * l_final)
    return out


# --------------------------- pure-JAX reference --------------------------------
def reference_forward(x, conv_params):
    mu = jnp.mean(x)
    var = jnp.mean((x - mu) ** 2)
    xn = (x - mu) / jnp.sqrt(var + BN_EPS)
    B, _, W = x.shape
    l_split = W // INPUT_SPLIT
    outs = []
    for s in range(INPUT_SPLIT):
        h = xn[:, :, s * l_split:(s + 1) * l_split]
        for (w, b) in conv_params:
            h = lax.conv_general_dilated(
                h, w, window_strides=(2,), padding=[(KERNEL_SZ // 2, KERNEL_SZ // 2)],
                dimension_numbers=('NCH', 'OIH', 'NCH'))
            h = h + b.reshape(1, -1, 1)
            h = jnp.where(h > 0, h, LRELU_SLOPE * h)
        outs.append(h)
    return jnp.concatenate(outs, axis=2)


if __name__ == "__main__":
    key = jax.random.PRNGKey(0)
    k_x, k1, k2, k3 = jax.random.split(key, 4)
    x = jax.random.normal(k_x, (BATCH, 1, INPUT_DIM), jnp.float32)

    # build the three Conv_block parameter sets
    conv_params = []
    in_ch = 1
    for kk in (k1, k2, k3):
        w, b = conv_block_params(kk, in_ch, OUT_CHAN, KERNEL_SZ)
        conv_params.append((w, b))
        in_ch = OUT_CHAN

    # lower each conv to a dense matmul and pack everything into one slab
    lowered = []
    lin = L_SPLIT
    for (w, b) in conv_params:
        Wd, bd, lin = lower_conv1d(w, b, lin)
        lowered.append((Wd, bd))
    slab = pack_params(lowered)

    out = fold_encoder_forward(x, slab)
    out = jax.block_until_ready(out)
    assert out.shape == (BATCH, OUT_CHAN, INPUT_SPLIT * L3_OUT)

    ref = reference_forward(x, conv_params)
    np.testing.assert_allclose(np.asarray(out), np.asarray(ref), rtol=1e-3, atol=1e-5)
    print("KERNEL_OK")
</pallas_src>

<mosaic_0001>
module attributes {stable_mosaic.version = 11 : i64} {
  func.func @fold_encoder_kernel(%arg0: memref<8x64xf32, #tpu.memory_space<vmem>>, %arg1: memref<336x256xf32, #tpu.memory_space<vmem>>, %arg2: memref<8x128xf32, #tpu.memory_space<vmem>>) attributes {dimension_semantics = [], scalar_prefetch = 0 : i64, scratch_operands = 0 : i64, tpu.core_type = #tpu.core_type<tc>} {
    %c0 = arith.constant 0 : index
    %c0_0 = arith.constant 0 : index
    %0 = vector.load %arg0[%c0, %c0_0] : memref<8x64xf32, #tpu.memory_space<vmem>>, vector<8x64xf32>
    %1 = vector.shape_cast %0 : vector<8x64xf32> to vector<1x8x64xf32>
    %cst = arith.constant dense<0.000000e+00> : vector<1xf32>
    %2 = vector.multi_reduction <add>, %1, %cst [1, 2] : vector<1x8x64xf32> to vector<1xf32>
    %3 = vector.shape_cast %2 : vector<1xf32> to vector<1x1x1xf32>
    %4 = vector.extract %3[0, 0, 0] : f32 from vector<1x1x1xf32>
    %cst_1 = arith.constant 5.120000e+02 : f32
    %5 = arith.divf %4, %cst_1 : f32
    %6 = vector.broadcast %5 : f32 to vector<8x64xf32>
    %7 = arith.subf %0, %6 : vector<8x64xf32>
    %8 = arith.mulf %7, %7 : vector<8x64xf32>
    %9 = vector.shape_cast %8 : vector<8x64xf32> to vector<1x8x64xf32>
    %cst_2 = arith.constant dense<0.000000e+00> : vector<1xf32>
    %10 = vector.multi_reduction <add>, %9, %cst_2 [1, 2] : vector<1x8x64xf32> to vector<1xf32>
    %11 = vector.shape_cast %10 : vector<1xf32> to vector<1x1x1xf32>
    %12 = vector.extract %11[0, 0, 0] : f32 from vector<1x1x1xf32>
    %cst_3 = arith.constant 5.120000e+02 : f32
    %13 = arith.divf %12, %cst_3 : f32
    %14 = vector.broadcast %5 : f32 to vector<8x64xf32>
    %15 = arith.subf %0, %14 : vector<8x64xf32>
    %cst_4 = arith.constant 1.000000e-03 : f32
    %16 = arith.addf %13, %cst_4 : f32
    %17 = math.rsqrt %16 : f32
    %18 = vector.broadcast %17 : f32 to vector<8x64xf32>
    %19 = arith.mulf %15, %18 : vector<8x64xf32>
    %c0_5 = arith.constant 0 : index
    %c0_6 = arith.constant 0 : index
    %20 = vector.load %arg1[%c0_5, %c0_6] : memref<336x256xf32, #tpu.memory_space<vmem>>, vector<8x256xf32>
    %c8 = arith.constant 8 : index
    %c0_7 = arith.constant 0 : index
    %21 = vector.load %arg1[%c8, %c0_7] : memref<336x256xf32, #tpu.memory_space<vmem>>, vector<8x128xf32>
    %c8_8 = arith.constant 8 : index
    %c128 = arith.constant 128 : index
    %22 = vector.load %arg1[%c8_8, %c128] : memref<336x256xf32, #tpu.memory_space<vmem>>, vector<8x128xf32>
    %c16 = arith.constant 16 : index
    %c0_9 = arith.constant 0 : index
    %23 = vector.load %arg1[%c16, %c0_9] : memref<336x256xf32, #tpu.memory_space<vmem>>, vector<64x256xf32>
    %c80 = arith.constant 80 : index
    %c0_10 = arith.constant 0 : index
    %24 = vector.load %arg1[%c80, %c0_10] : memref<336x256xf32, #tpu.memory_space<vmem>>, vector<256x128xf32>
    %c80_11 = arith.constant 80 : index
    %c128_12 = arith.constant 128 : index
    %25 = vector.load %arg1[%c80_11, %c128_12] : memref<336x256xf32, #tpu.memory_space<vmem>>, vector<128x128xf32>
    %cst_13 = arith.constant dense<0.000000e+00> : vector<8x256xf32>
    %26 = tpu.matmul %19, %23, %cst_13 {dimension_numbers = #tpu.dot_dimension_numbers<[1], [0], [0], [1], [0, 0, 1, 1], [], []>} : vector<8x64xf32>, vector<64x256xf32>, vector<8x256xf32> -> vector<8x256xf32>
    %27 = arith.addf %26, %20 : vector<8x256xf32>
    %cst_14 = arith.constant 0.000000e+00 : f32
    %28 = vector.broadcast %cst_14 : f32 to vector<8x256xf32>
    %29 = arith.cmpf ogt, %27, %28 : vector<8x256xf32>
    %cst_15 = arith.constant 0.00999999977 : f32
    %30 = vector.broadcast %cst_15 : f32 to vector<8x256xf32>
    %31 = arith.mulf %30, %27 : vector<8x256xf32>
    %32 = arith.select %29, %27, %31 : vector<8x256xi1>, vector<8x256xf32>
    %cst_16 = arith.constant dense<0.000000e+00> : vector<8x128xf32>
    %33 = tpu.matmul %32, %24, %cst_16 {dimension_numbers = #tpu.dot_dimension_numbers<[1], [0], [0], [1], [0, 0, 1, 1], [], []>} : vector<8x256xf32>, vector<256x128xf32>, vector<8x128xf32> -> vector<8x128xf32>
    %34 = arith.addf %33, %21 : vector<8x128xf32>
    %cst_17 = arith.constant 0.000000e+00 : f32
    %35 = vector.broadcast %cst_17 : f32 to vector<8x128xf32>
    %36 = arith.cmpf ogt, %34, %35 : vector<8x128xf32>
    %cst_18 = arith.constant 0.00999999977 : f32
    %37 = vector.broadcast %cst_18 : f32 to vector<8x128xf32>
    %38 = arith.mulf %37, %34 : vector<8x128xf32>
    %39 = arith.select %36, %34, %38 : vector<8x128xi1>, vector<8x128xf32>
    %cst_19 = arith.constant dense<0.000000e+00> : vector<8x128xf32>
    %40 = tpu.matmul %39, %25, %cst_19 {dimension_numbers = #tpu.dot_dimension_numbers<[1], [0], [0], [1], [0, 0, 1, 1], [], []>} : vector<8x128xf32>, vector<128x128xf32>, vector<8x128xf32> -> vector<8x128xf32>
    %41 = arith.addf %40, %22 : vector<8x128xf32>
    %cst_20 = arith.constant 0.000000e+00 : f32
    %42 = vector.broadcast %cst_20 : f32 to vector<8x128xf32>
    %43 = arith.cmpf ogt, %41, %42 : vector<8x128xf32>
    %cst_21 = arith.constant 0.00999999977 : f32
    %44 = vector.broadcast %cst_21 : f32 to vector<8x128xf32>
    %45 = arith.mulf %44, %41 : vector<8x128xf32>
    %46 = arith.select %43, %41, %45 : vector<8x128xi1>, vector<8x128xf32>
    %c0_22 = arith.constant 0 : index
    %c0_23 = arith.constant 0 : index
    %47 = vector.load %arg2[%c0_22, %c0_23] : memref<8x128xf32, #tpu.memory_space<vmem>>, vector<8x128xf32>
    tpu.vector_store %arg2[%c0_22, %c0_23], %46 {strides = array<i32>} : memref<8x128xf32, #tpu.memory_space<vmem>>, vector<8x128xf32>,
    return
  }
}

</mosaic_0001>

<llo_original>
// kernel: squeeze.1
$region0: #{squeeze.1}
  %s0 = inlined_call_operand.vmem [shape: f32[2,256], index: 0, kind: input, shape index: {}]
  %s1 = inlined_call_operand.vmem [shape: f32[8,64], index: 1, kind: output, shape index: {}]
  $region1: #{squeeze.1} parent=0
    #allocation0 [shape = 'u8[8192]{0}', space=vmem, size = 0x2000, scoped, tag = 'scoped mem for input reshape']
    %s3 = sshllo.u32 0, 2
    %s4 = scalar_lea.vmem %s0, 2
    %v5 = vld [vmem:[%s4] sm:%s3]
    %s6 = scalar_lea.vmem [#allocation0], 8
    %7 = vst [vmem:[%s6] sm:%s3] %v5
    %v8 = vld [vmem:[%s0] sm:%s3]
    %9 = vst [vmem:[#allocation0] sm:%s3] %v8
    %v10 = vld [vmem:[#allocation0] sm:$0x3]
    %vm11 = vcmask 523264
    %12 = vst.msk [vmem:[%s1] ss:$4 sm:$0x3] %vm11, %v10
    %s13 = scalar_lea.vmem [#allocation0], 8
    %v14 = vld [vmem:[%s13] sm:$0x3]
    %vm15 = vcmask 523264
    %s16 = scalar_lea.vmem %s1, 2
    %17 = vst.msk [vmem:[%s16] ss:$4 sm:$0x3] %vm15, %v14
    %v18 = vld.sshfl [vmem:[#allocation0] sm:$0xff pattern:$0x99999180]
    %19 = vrot.lane.b32.xlu0 %v18, 64
    %v20 = vpop.permute.xlu0 %19
    %vm21 = vcmask 523264
    %s22 = scalar_lea.vmem %s1, 1
    %23 = vst.msk [vmem:[%s22] ss:$2 sm:$0xf] %vm21, %v20

// kernel: fold_encoder_forward.1
$region0: #{fold_encoder_forward.1}
  #allocation0 [shape = 'u32[]', space=smem, size = 0x4, offset = 0x4, fixed_abs, tag = 'smem constant byte address 0x4 - core index']
  #allocation1 [shape = 'u32[144,128]{1,0:T(1,128)}', space=vmem, size = 0x12000, scoped, tag = 'internal scratch']
  %s0 = inlined_call_operand.vmem [shape: f32[8,64], index: 0, kind: input, shape index: {}]
  %s1 = inlined_call_operand.hbm [shape: f32[336,256], index: 1, kind: input, shape index: {}]
  %s2 = inlined_call_operand.vmem [shape: f32[8,128], index: 2, kind: output, shape index: {}]
  %s3 = sld [smem:[#allocation0]]
  $region22: #{fold_encoder_forward.1} parent=0
    _
  %s5 = ssub.s32 1, %s3
  %s6 = scalar_select 0, %s5, %s3
  $region1: #{fold_encoder_forward.1} parent=0
    #allocation2 [shape = 'u8[344064]{0}', space=vmem, size = 0x54000, scoped, tag = 'input window, operand 1, single buffered']
    #allocation3 [shape = 's32[1]{0}', space=sflag, size = 0x4, scoped, tag = 'scoped memory for fold_encoder_forward.1']
    %7 = vsyncpa [#allocation3], 0
    // Predicated region
    $region2: #{fold_encoder_forward.1} parent=1 // pred_check
      _
    $region3: #{fold_encoder_forward.1} parent=1 // pred_check_branch
      %9 = sbr.rel (0) target = $region5
    $region4: #{fold_encoder_forward.1} parent=1 // pred_region
      _
    $region5: #{fold_encoder_forward.1} parent=1 // pred_fallthru
      _
    // Predicated region
    $region6: #{fold_encoder_forward.1} parent=1 // pred_check
      _
    $region7: #{fold_encoder_forward.1} parent=1 // pred_check_branch
      %11 = sbr.rel (0) target = $region9
    $region8: #{fold_encoder_forward.1} parent=1 // pred_region
      %s13 = ssub.s32 10752, 10752
      %14 = vsyncadd [#allocation3], %s13
      %s15 = sshll.u32 [#allocation2], 4
      %s16 = int_to_ptr.vmem [resolvable:$true] %s15
      %21 = dma.hbm_to_vmem [thread:$0]  %s1, 10752, %s16, [#allocation3], 256, 256, 16
    $region9: #{fold_encoder_forward.1} parent=1 // pred_fallthru
      _
    // Predicated region
    $region10: #{fold_encoder_forward.1} parent=1 // pred_check
      _
    $region11: #{fold_encoder_forward.1} parent=1 // pred_check_branch
      %23 = sbr.rel (0) target = $region13
    $region12: #{fold_encoder_forward.1} parent=1 // pred_region
      %24 = dma.done [#allocation3], 10752
    $region13: #{fold_encoder_forward.1} parent=1 // pred_fallthru
      _
    %v25 = vld [vmem:[%s0] sm:$0xff]
    %vm26 = vcmask 523264
    %v27 = vsel %vm26, %v25, 0.0
    %28 = vadd.xlane.f32.xlu0 %v27
    %v29 = vpop.xlane.xlu0 %28
    %v30 = vrot.slane %v29, 4
    %v31 = vadd.f32 %v29, %v30
    %v32 = vrot.slane %v31, 2
    %v33 = vadd.f32 %v31, %v32
    %v34 = vrot.slane %v33, 1
    %v35 = vadd.f32 %v33, %v34
    %s36 = vtos %v35
    %v37 = vrcp.pop 512.0
    %s38 = vtos %v37
    %s39 = smul.f32 %s36, %s38
    %v40 = vstv %s39
    %v41 = vsub.f32 %v25, %v40
    %v42 = vmul.f32 %v41, %v41
    %v43 = vsel %vm26, %v42, 0.0
    %44 = vadd.xlane.f32.xlu0 %v43
    %v45 = vpop.xlane.xlu0 %44
    %v46 = vrot.slane %v45, 4
    %v47 = vadd.f32 %v45, %v46
    %v48 = vrot.slane %v47, 2
    %v49 = vadd.f32 %v47, %v48
    %v50 = vrot.slane %v49, 1
    %v51 = vadd.f32 %v49, %v50
    %s52 = vtos %v51
    %v53 = vrcp.pop 512.0
    %s54 = vtos %v53
    %s55 = smul.f32 %s52, %s54
    %s56 = sadd.f32 %s55, 0.001
    %v57 = vstv %s56
    %v58 = vrsqrt.pop %v57
    %s59 = vtos %v58
    %v60 = vstv %s59
    %v61 = vmul.f32 %v41, %v60
    %v62 = vld [vmem:[#allocation2] sm:$0xff]
    %v63 = vld [vmem:[#allocation2 + $0x8] sm:$0xff]
    %v64 = vld [vmem:[#allocation2 + $0x10] sm:$0xff]
    %v65 = vld [vmem:[#allocation2 + $0x18] sm:$0xff]
    %v66 = vld [vmem:[#allocation2 + $0x20] sm:$0xff]
    %v67 = vld [vmem:[#allocation2 + $0x28] sm:$0xff]
    %v68 = vld [vmem:[#allocation2 + $0x30] sm:$0xff]
    %v69 = vld [vmem:[#allocation2 + $0x38] sm:$0xff]
    %v70 = vld [vmem:[#allocation2 + $0x40] sm:$0xff]
    %v71 = vld [vmem:[#allocation2 + $0x48] sm:$0xff]
    %v72 = vld [vmem:[#allocation2 + $0x50] sm:$0xff]
    %v73 = vld [vmem:[#allocation2 + $0x58] sm:$0xff]
    %v74 = vld [vmem:[#allocation2 + $0x60] sm:$0xff]
    %v75 = vld [vmem:[#allocation2 + $0x68] sm:$0xff]
    %v76 = vld [vmem:[#allocation2 + $0x70] sm:$0xff]
    %v77 = vld [vmem:[#allocation2 + $0x78] sm:$0xff]
    %v78 = vld [vmem:[#allocation2 + $0x80] sm:$0xff]
    %v79 = vld [vmem:[#allocation2 + $0x88] sm:$0xff]
    %v80 = vld [vmem:[#allocation2 + $0x90] sm:$0xff]
    %v81 = vld [vmem:[#allocation2 + $0x98] sm:$0xff]
    %v82 = vld [vmem:[#allocation2 + $0xa0] sm:$0xff]
    %v83 = vld [vmem:[#allocation2 + $0xb0] sm:$0xff]
    %v84 = vld [vmem:[#allocation2 + $0xc0] sm:$0xff]
    %v85 = vld [vmem:[#allocation2 + $0xd0] sm:$0xff]
    %v86 = vld [vmem:[#allocation2 + $0xe0] sm:$0xff]
    %v87 = vld [vmem:[#allocation2 + $0xf0] sm:$0xff]
    %v88 = vld [vmem:[#allocation2 + $0x100] sm:$0xff]
    %v89 = vld [vmem:[#allocation2 + $0x110] sm:$0xff]
    %v90 = vld [vmem:[#allocation2 + $0x120] sm:$0xff]
    %v91 = vld [vmem:[#allocation2 + $0x130] sm:$0xff]
    %v92 = vld [vmem:[#allocation2 + $0x140] sm:$0xff]
    %v93 = vld [vmem:[#allocation2 + $0x150] sm:$0xff]
    %v94 = vld [vmem:[#allocation2 + $0x160] sm:$0xff]
    %v95 = vld [vmem:[#allocation2 + $0x170] sm:$0xff]
    %v96 = vld [vmem:[#allocation2 + $0x180] sm:$0xff]
    %v97 = vld [vmem:[#allocation2 + $0x190] sm:$0xff]
    %v98 = vld [vmem:[#allocation2 + $0x1a0] sm:$0xff]
    %v99 = vld [vmem:[#allocation2 + $0x1b0] sm:$0xff]
    %v100 = vld [vmem:[#allocation2 + $0x1c0] sm:$0xff]
    %v101 = vld [vmem:[#allocation2 + $0x1d0] sm:$0xff]
    %v102 = vld [vmem:[#allocation2 + $0x1e0] sm:$0xff]
    %v103 = vld [vmem:[#allocation2 + $0x1f0] sm:$0xff]
    %v104 = vld [vmem:[#allocation2 + $0x200] sm:$0xff]
    %v105 = vld [vmem:[#allocation2 + $0x210] sm:$0xff]
    %v106 = vld [vmem:[#allocation2 + $0x220] sm:$0xff]
    %v107 = vld [vmem:[#allocation2 + $0x230] sm:$0xff]
    %v108 = vld [vmem:[#allocation2 + $0x240] sm:$0xff]
    %v109 = vld [vmem:[#allocation2 + $0x250] sm:$0xff]
    %v110 = vld [vmem:[#allocation2 + $0x260] sm:$0xff]
    %v111 = vld [vmem:[#allocation2 + $0x270] sm:$0xff]
    %v112 = vld [vmem:[#allocation2 + $0x280] sm:$0xff]
    %v113 = vld [vmem:[#allocation2 + $0x290] sm:$0xff]
    %v114 = vld [vmem:[#allocation2 + $0xa8] sm:$0xff]
    %v115 = vld [vmem:[#allocation2 + $0xb8] sm:$0xff]
    %v116 = vld [vmem:[#allocation2 + $0xc8] sm:$0xff]
    %v117 = vld [vmem:[#allocation2 + $0xd8] sm:$0xff]
    %v118 = vld [vmem:[#allocation2 + $0xe8] sm:$0xff]
    %v119 = vld [vmem:[#allocation2 + $0xf8] sm:$0xff]
    %v120 = vld [vmem:[#allocation2 + $0x108] sm:$0xff]
    %v121 = vld [vmem:[#allocation2 + $0x118] sm:$0xff]
    %v122 = vld [vmem:[#allocation2 + $0x128] sm:$0xff]
    %v123 = vld [vmem:[#allocation2 + $0x138] sm:$0xff]
    %v124 = vld [vmem:[#allocation2 + $0x148] sm:$0xff]
    %v125 = vld [vmem:[#allocation2 + $0x158] sm:$0xff]
    %v126 = vld [vmem:[#allocation2 + $0x168] sm:$0xff]
    %v127 = vld [vmem:[#allocation2 + $0x178] sm:$0xff]
    %v128 = vld [vmem:[#allocation2 + $0x188] sm:$0xff]
    %v129 = vld [vmem:[#allocation2 + $0x198] sm:$0xff]
    %v131 = vsel %vm26, %v61, 0
    %133 = vmatprep.subr.mxu0 %v67
    %134 = vmatpush1.msra.mxu0 %v66
    %135 = vmatprep.subr.mxu0 %v69
    %136 = vmatpush1.msra.mxu0 %v68
    %137 = vmatprep.subr.mxu0 %v71
    %138 = vmatpush1.msra.mxu0 %v70
    %139 = vmatprep.subr.mxu0 %v73
    %140 = vmatpush1.msra.mxu0 %v72
    %141 = vmatprep.subr.mxu0 %v75
    %142 = vmatpush1.msra.mxu0 %v74
    %143 = vmatprep.subr.mxu0 %v77
    %144 = vmatpush1.msra.mxu0 %v76
    %145 = vmatprep.subr.mxu0 %v79
    %146 = vmatpush1.msra.mxu0 %v78
    %147 = vmatprep.subr.mxu0 %v81
    %148 = vmatpush1.msra.mxu0 %v80
    %149 = vmatprep.subr.mxu0 0.0
    %150 = vmatpush1.msra.mxu0 0.0
    %151 = vmatprep.subr.mxu0 0.0
    %152 = vmatpush1.msra.mxu0 0.0
    %153 = vmatprep.subr.mxu0 0.0
    %154 = vmatpush1.msra.mxu0 0.0
    %155 = vmatprep.subr.mxu0 0.0
    %156 = vmatpush1.msra.mxu0 0.0
    %157 = vmatprep.subr.mxu0 0.0
    %158 = vmatpush1.msra.mxu0 0.0
    %159 = vmatprep.subr.mxu0 0.0
    %160 = vmatpush1.msra.mxu0 0.0
    %161 = vmatprep.subr.mxu0 0.0
    %162 = vmatpush1.msra.mxu0 0.0
    %163 = vmatprep.subr.mxu0 0.0
    %164 = vmatpush1.msra.mxu0 0.0
    %165 = vmatprep.subr.mxu0 0.0
    %166 = vmatpush1.msra.mxu0 0.0
    %167 = vmatprep.subr.mxu0 0.0
    %168 = vmatpush1.msra.mxu0 0.0
    %169 = vmatprep.subr.mxu0 0.0
    %170 = vmatpush1.msra.mxu0 0.0
    %171 = vmatprep.subr.mxu0 0.0
    %172 = vmatpush1.msra.mxu0 0.0
    %173 = vmatprep.subr.mxu0 0.0
    %174 = vmatpush1.msra.mxu0 0.0
    %175 = vmatprep.subr.mxu0 0.0
    %176 = vmatpush1.msra.mxu0 0.0
    %177 = vmatprep.subr.mxu0 0.0
    %178 = vmatpush1.msra.mxu0 0.0
    %179 = vmatprep.subr.mxu0 0.0
    %180 = vmatpush1.msra.mxu0 0.0
    %181 = vmatprep.subr.mxu0 0.0
    %182 = vmatpush1.msra.mxu0 0.0
    %183 = vmatprep.subr.mxu0 0.0
    %184 = vmatpush1.msra.mxu0 0.0
    %185 = vmatprep.subr.mxu0 0.0
    %186 = vmatpush1.msra.mxu0 0.0
    %187 = vmatprep.subr.mxu0 0.0
    %188 = vmatpush1.msra.mxu0 0.0
    %189 = vmatprep.subr.mxu0 0.0
    %190 = vmatpush1.msra.mxu0 0.0
    %191 = vmatprep.subr.mxu0 0.0
    %192 = vmatpush1.msra.mxu0 0.0
    %193 = vmatprep.subr.mxu0 0.0
    %194 = vmatpush1.msra.mxu0 0.0
    %195 = vmatprep.subr.mxu0 0.0
    %196 = vmatpush1.msra.mxu0 0.0
    %197 = vmatprep.mubr.f32.mxu0 0.0
    %198 = vmatmul.mubr.f32.gmra.mrb[0].mxu0 %v131
    %v199 = vpop.f32.mrb[0].mxu0
    %v200 = vadd.f32 %v62, %v199
    %v201 = vpop.f32.mrb[0].mxu0
    %v202 = vadd.f32 %v63, %v201
    %203 = vdwg.mxu0
    %vm204 = vcmp.gt.f32.partialorder %v200, 0.0
    %vm205 = vcmp.gt.f32.partialorder %v202, 0.0
    %v206 = vmul.f32 %v200, 0.01
    %v207 = vmul.f32 %v202, 0.01
    %v208 = vsel %vm204, %v200, %v206
    %v209 = vsel %vm205, %v202, %v207
    %210 = vmatprep.subr.mxu0 0.0
    %211 = vmatpush1.msra.mxu0 %v82
    %212 = vmatprep.subr.mxu0 0.0
    %213 = vmatpush1.msra.mxu0 %v83
    %214 = vmatprep.subr.mxu0 0.0
    %215 = vmatpush1.msra.mxu0 %v84
    %216 = vmatprep.subr.mxu0 0.0
    %217 = vmatpush1.msra.mxu0 %v85
    %218 = vmatprep.subr.mxu0 0.0
    %219 = vmatpush1.msra.mxu0 %v86
    %220 = vmatprep.subr.mxu0 0.0
    %221 = vmatpush1.msra.mxu0 %v87
    %222 = vmatprep.subr.mxu0 0.0
    %223 = vmatpush1.msra.mxu0 %v88
    %224 = vmatprep.subr.mxu0 0.0
    %225 = vmatpush1.msra.mxu0 %v89
    %226 = vmatprep.subr.mxu0 0.0
    %227 = vmatpush1.msra.mxu0 %v90
    %228 = vmatprep.subr.mxu0 0.0
    %229 = vmatpush1.msra.mxu0 %v91
    %230 = vmatprep.subr.mxu0 0.0
    %231 = vmatpush1.msra.mxu0 %v92
    %232 = vmatprep.subr.mxu0 0.0
    %233 = vmatpush1.msra.mxu0 %v93
    %234 = vmatprep.subr.mxu0 0.0
    %235 = vmatpush1.msra.mxu0 %v94
    %236 = vmatprep.subr.mxu0 0.0
    %237 = vmatpush1.msra.mxu0 %v95
    %238 = vmatprep.subr.mxu0 0.0
    %239 = vmatpush1.msra.mxu0 %v96
    %240 = vmatprep.subr.mxu0 0.0
    %241 = vmatpush1.msra.mxu0 %v97
    %242 = vmatprep.subr.mxu0 0.0
    %243 = vmatpush1.msra.mxu0 %v98
    %244 = vmatprep.subr.mxu0 0.0
    %245 = vmatpush1.msra.mxu0 %v99
    %246 = vmatprep.subr.mxu0 0.0
    %247 = vmatpush1.msra.mxu0 %v100
    %248 = vmatprep.subr.mxu0 0.0
    %249 = vmatpush1.msra.mxu0 %v101
    %250 = vmatprep.subr.mxu0 0.0
    %251 = vmatpush1.msra.mxu0 %v102
    %252 = vmatprep.subr.mxu0 0.0
    %253 = vmatpush1.msra.mxu0 %v103
    %254 = vmatprep.subr.mxu0 0.0
    %255 = vmatpush1.msra.mxu0 %v104
    %256 = vmatprep.subr.mxu0 0.0
    %257 = vmatpush1.msra.mxu0 %v105
    %258 = vmatprep.subr.mxu0 0.0
    %259 = vmatpush1.msra.mxu0 %v106
    %260 = vmatprep.subr.mxu0 0.0
    %261 = vmatpush1.msra.mxu0 %v107
    %262 = vmatprep.subr.mxu0 0.0
    %263 = vmatpush1.msra.mxu0 %v108
    %264 = vmatprep.subr.mxu0 0.0
    %265 = vmatpush1.msra.mxu0 %v109
    %266 = vmatprep.subr.mxu0 0.0
    %267 = vmatpush1.msra.mxu0 %v110
    %268 = vmatprep.subr.mxu0 0.0
    %269 = vmatpush1.msra.mxu0 %v111
    %270 = vmatprep.subr.mxu0 0.0
    %271 = vmatpush1.msra.mxu0 %v112
    %272 = vmatprep.subr.mxu0 0.0
    %273 = vmatpush1.msra.mxu0 %v113
    %274 = vmatprep.mubr.f32.mxu0 %v209
    %275 = vmatmul.mubr.f32.gmra.mrb[0].mxu0 %v208
    %v276 = vpop.f32.mrb[0].mxu0
    %v277 = vadd.f32 %v64, %v276
    %v278 = vpop.f32.mrb[0].mxu0
    %279 = vdwg.mxu0
    %vm280 = vcmp.gt.f32.partialorder %v277, 0.0
    %v281 = vmul.f32 %v277, 0.01
    %v282 = vsel %vm280, %v277, %v281
    %283 = vmatprep.subr.mxu0 0.0
    %284 = vmatpush1.msra.mxu0 %v114
    %285 = vmatprep.subr.mxu0 0.0
    %286 = vmatpush1.msra.mxu0 %v115
    %287 = vmatprep.subr.mxu0 0.0
    %288 = vmatpush1.msra.mxu0 %v116
    %289 = vmatprep.subr.mxu0 0.0
    %290 = vmatpush1.msra.mxu0 %v117
    %291 = vmatprep.subr.mxu0 0.0
    %292 = vmatpush1.msra.mxu0 %v118
    %293 = vmatprep.subr.mxu0 0.0
    %294 = vmatpush1.msra.mxu0 %v119
    %295 = vmatprep.subr.mxu0 0.0
    %296 = vmatpush1.msra.mxu0 %v120
    %297 = vmatprep.subr.mxu0 0.0
    %298 = vmatpush1.msra.mxu0 %v121
    %299 = vmatprep.subr.mxu0 0.0
    %300 = vmatpush1.msra.mxu0 %v122
    %301 = vmatprep.subr.mxu0 0.0
    %302 = vmatpush1.msra.mxu0 %v123
    %303 = vmatprep.subr.mxu0 0.0
    %304 = vmatpush1.msra.mxu0 %v124
    %305 = vmatprep.subr.mxu0 0.0
    %306 = vmatpush1.msra.mxu0 %v125
    %307 = vmatprep.subr.mxu0 0.0
    %308 = vmatpush1.msra.mxu0 %v126
    %309 = vmatprep.subr.mxu0 0.0
    %310 = vmatpush1.msra.mxu0 %v127
    %311 = vmatprep.subr.mxu0 0.0
    %312 = vmatpush1.msra.mxu0 %v128
    %313 = vmatprep.subr.mxu0 0.0
    %314 = vmatpush1.msra.mxu0 %v129
    %315 = vmatprep.subr.mxu0 0.0
    %316 = vmatpush1.msra.mxu0 0.0
    %317 = vmatprep.subr.mxu0 0.0
    %318 = vmatpush1.msra.mxu0 0.0
    %319 = vmatprep.subr.mxu0 0.0
    %320 = vmatpush1.msra.mxu0 0.0
    %321 = vmatprep.subr.mxu0 0.0
    %322 = vmatpush1.msra.mxu0 0.0
    %323 = vmatprep.subr.mxu0 0.0
    %324 = vmatpush1.msra.mxu0 0.0
    %325 = vmatprep.subr.mxu0 0.0
    %326 = vmatpush1.msra.mxu0 0.0
    %327 = vmatprep.subr.mxu0 0.0
    %328 = vmatpush1.msra.mxu0 0.0
    %329 = vmatprep.subr.mxu0 0.0
    %330 = vmatpush1.msra.mxu0 0.0
    %331 = vmatprep.subr.mxu0 0.0
    %332 = vmatpush1.msra.mxu0 0.0
    %333 = vmatprep.subr.mxu0 0.0
    %334 = vmatpush1.msra.mxu0 0.0
    %335 = vmatprep.subr.mxu0 0.0
    %336 = vmatpush1.msra.mxu0 0.0
    %337 = vmatprep.subr.mxu0 0.0
    %338 = vmatpush1.msra.mxu0 0.0
    %339 = vmatprep.subr.mxu0 0.0
    %340 = vmatpush1.msra.mxu0 0.0
    %341 = vmatprep.subr.mxu0 0.0
    %342 = vmatpush1.msra.mxu0 0.0
    %343 = vmatprep.subr.mxu0 0.0
    %344 = vmatpush1.msra.mxu0 0.0
    %345 = vmatprep.subr.mxu0 0.0
    %346 = vmatpush1.msra.mxu0 0.0
    %347 = vmatprep.mubr.f32.mxu0 0.0
    %348 = vmatmul.mubr.f32.gmra.mrb[0].mxu0 %v282
    %v349 = vpop.f32.mrb[0].mxu0
    %v350 = vadd.f32 %v65, %v349
    %v351 = vpop.f32.mrb[0].mxu0
    %352 = vdwg.mxu0
    %vm353 = vcmp.gt.f32.partialorder %v350, 0.0
    %v354 = vmul.f32 %v350, 0.01
    %v355 = vsel %vm353, %v350, %v354
    %356 = vst [vmem:[%s2] sm:$0xff] %v355
    // Predicated region
    $region14: #{fold_encoder_forward.1} parent=1 // pred_check
      _
    $region15: #{fold_encoder_forward.1} parent=1 // pred_check_branch
      %358 = sbr.rel (0) target = $region17
    $region16: #{fold_encoder_forward.1} parent=1 // pred_region
      _
    $region17: #{fold_encoder_forward.1} parent=1 // pred_fallthru
      _
    // Predicated region
    $region18: #{fold_encoder_forward.1} parent=1 // pred_check
      _
    $region19: #{fold_encoder_forward.1} parent=1 // pred_check_branch
      %360 = sbr.rel (0) target = $region21
    $region20: #{fold_encoder_forward.1} parent=1 // pred_region
      _
    $region21: #{fold_encoder_forward.1} parent=1 // pred_fallthru
      _
    %361 = vsyncpa [#allocation3], 1

</llo_original>
